<compile_context>
chip_gen: v7x
topology: tpu7x:2x2x1
jax: 0.10.0
libtpu: 0.0.40
codegen_flags: <defaults>
</compile_context>

<pallas_src>
import functools

import jax
import jax.numpy as jnp
from jax import lax
from jax.experimental import pallas as pl
from jax.experimental.pallas import tpu as pltpu


# Conservative per-step VMEM budget for the pipelined blocks: sized so the same strip
# choice fits v7x (64 MiB physical) as well as v5e/v6e (128 MiB physical).
_VMEM_STRIP_BUDGET = 24 * 1024 * 1024
# Raise the default scoped VMEM limit (16 MiB v5e / 32 MiB v6e/v7x defaults).
_VMEM_LIMIT_BYTES = 64 * 1024 * 1024


def _choose_strip_rows(H, W, Cin, Cout, budget=_VMEM_STRIP_BUDGET):
    """Pick the strip height Th (a divisor of H).

    Legality: the flattened (Cout, Th*W) output block needs Th*W % 128 == 0 unless
    Th == H (full-dim block).  Among legal strips pick the largest that fits the
    VMEM budget (double-buffered bf16 input strip + f32 output strip + resident
    weights), preferring a sub-image strip so each image contributes >= 2 grid
    steps (pipelining + megacore load balance).
    """
    def legal(t):
        return H % t == 0 and (t == H or (t * W) % 128 == 0)

    def vmem_bytes(t):
        in_strip = Cin * ((t + 2) * W + 2) * 2        # bf16 halo strip
        out_strip = Cout * t * W * 4                  # f32 output strip
        resident = 9 * Cout * Cin * 2 + Cout * 4 + 2 * t * W * 2   # w + b + masks
        return 2 * (in_strip + out_strip) + 2 * resident

    cands = [t for t in range(1, H + 1) if legal(t)]
    fitting = [t for t in cands if vmem_bytes(t) <= budget]
    if not fitting:
        return min(cands)                 # may spill, but still compiles
    sub = [t for t in fitting if t < H]   # prefer >1 strip per image
    return max(sub) if sub else max(fitting)


def _rpn_conv_relu_kernel(x_ref, w_ref, b_ref, e_ref, o_ref, *, Th, W, Cin, Cout):
    """One (image, row-strip) grid step: 3x3 conv (padding=1) + bias + ReLU.

    x_ref: (1, 1, Cin, (Th+2)*W + 2)  bf16 flattened strip: 1-row zero halo above and
                                      below plus one zero lane at each end, so every
                                      tap is a pure in-bounds lane slice.
    w_ref: (3, 3, Cout, Cin)          bf16 weights, tap-indexed [dy, dx]   (resident)
    b_ref: (Cout, 1)                  f32                                   (resident)
    e_ref: (2, Th*W)                  bf16 {0,1} column-edge masks (x!=0, x!=W-1)
    o_ref: (1, Cout, Th*W)            f32 lane-dense output strip
    """
    L = Th * W
    xs = x_ref[0, 0]                                   # (Cin, (Th+2)*W + 2)
    not_left = e_ref[0:1, :]                           # (1, L)
    not_right = e_ref[1:2, :]                          # (1, L)

    acc = jnp.zeros((Cout, L), jnp.float32)
    for dy in range(3):
        for dx in range(3):
            start = dy * W + dx
            tap = xs[:, start:start + L]               # pure lane slice, (Cin, L)
            if dx == 0:          # input column x-1: invalid where x == 0
                tap = tap * not_left
            elif dx == 2:        # input column x+1: invalid where x == W-1
                tap = tap * not_right
            acc += jnp.dot(w_ref[dy, dx], tap,
                           preferred_element_type=jnp.float32)

    acc += b_ref[...]                                  # (Cout, 1) broadcast
    o_ref[0] = jnp.maximum(acc, 0.0).astype(o_ref.dtype)


@functools.partial(jax.jit, static_argnames=("Th", "H", "W"))
def _rpn_conv_relu_level(feat, w_taps, b2, *, Th, H, W):
    """feat: (N, Cin, H, W) f32; w_taps: (3,3,Cout,Cin) bf16; b2: (Cout,1) f32."""
    N, Cin, _, _ = feat.shape
    Cout = w_taps.shape[2]
    S = H // Th
    L = Th * W                         # output lanes per strip
    Ls = (Th + 2) * W + 2              # input lanes per strip (halo + end lanes)

    # ---- layout plumbing (XLA, once per level): zero-bordered halo strips ----
    x = feat.astype(jnp.bfloat16).reshape(N, Cin, H * W)
    zrow = jnp.zeros((N, Cin, W), jnp.bfloat16)
    zone = jnp.zeros((N, Cin, 1), jnp.bfloat16)
    xpad = jnp.concatenate([zone, zrow, x, zrow, zone], axis=-1)   # (N,Cin,(H+2)W+2)
    strips = jnp.stack(
        [xpad[:, :, s * Th * W: s * Th * W + Ls] for s in range(S)],
        axis=1)                                                    # (N,S,Cin,Ls)

    # Column-edge masks, precomputed (no // or % inside the kernel).
    cols = jnp.arange(L, dtype=jnp.int32) % W
    edge = jnp.stack([cols != 0, cols != W - 1]).astype(jnp.bfloat16)   # (2, L)

    kernel = functools.partial(_rpn_conv_relu_kernel,
                               Th=Th, W=W, Cin=Cin, Cout=Cout)
    y = pl.pallas_call(
        kernel,
        out_shape=jax.ShapeDtypeStruct((N, Cout, H * W), feat.dtype),
        grid_spec=pltpu.PrefetchScalarGridSpec(
            num_scalar_prefetch=0,
            grid=(N, S),
            in_specs=[
                pl.BlockSpec((1, 1, Cin, Ls), lambda n, s: (n, s, 0, 0)),
                pl.BlockSpec((3, 3, Cout, Cin), lambda n, s: (0, 0, 0, 0)),  # resident
                pl.BlockSpec((Cout, 1), lambda n, s: (0, 0)),                # resident
                pl.BlockSpec((2, L), lambda n, s: (0, 0)),                   # resident
            ],
            out_specs=pl.BlockSpec((1, Cout, L), lambda n, s: (n, 0, s)),
        ),
        compiler_params=pltpu.CompilerParams(
            dimension_semantics=("parallel", "parallel"),
            vmem_limit_bytes=_VMEM_LIMIT_BYTES),
    )(strips, w_taps, b2, edge)
    return y.reshape(N, Cout, H, W)


def rpn_feat_forward(feats_nchw, weight_oihw, bias):
    """Mirrors RPNFeat.forward: shared 3x3 conv + ReLU applied to every level.

    feats_nchw: list of (N, Cin, H, W) arrays (PyTorch NCHW convention).
    weight_oihw: (Cout, Cin, 3, 3) (PyTorch Conv2d weight convention).
    bias: (Cout,)
    Returns list of (N, Cout, H, W) arrays.
    """
    Cout, Cin, KH, KW = weight_oihw.shape
    assert (KH, KW) == (3, 3)
    # Parameter-only repack: (Cout, Cin, 3, 3) -> (3, 3, Cout, Cin) so each tap
    # w_taps[dy, dx] is a ready-to-use (Cout, Cin) bf16 MXU operand.
    w_taps = jnp.transpose(weight_oihw, (2, 3, 0, 1)).astype(jnp.bfloat16)
    b2 = bias.astype(jnp.float32).reshape(Cout, 1)

    outs = []
    for feat in feats_nchw:
        N, C, H, W = feat.shape
        Th = _choose_strip_rows(H, W, C, Cout)
        outs.append(_rpn_conv_relu_level(feat, w_taps, b2, Th=Th, H=H, W=W))
    return outs


def _reference(feat_nchw, weight_oihw, bias):
    y = lax.conv_general_dilated(
        feat_nchw, weight_oihw,
        window_strides=(1, 1), padding=((1, 1), (1, 1)),
        dimension_numbers=("NCHW", "OIHW", "NCHW"))
    return jax.nn.relu(y + bias.reshape(1, -1, 1, 1))


if __name__ == "__main__":
    key = jax.random.PRNGKey(0)
    k_w, k_b, k_x1, k_x2 = jax.random.split(key, 4)

    # Small, module-consistent shapes (in_channel=4, out_channel=8).
    N, Cin, Cout = 2, 4, 8
    H1 = W1 = 16
    H2 = W2 = 8

    weight = jax.random.normal(k_w, (Cout, Cin, 3, 3), dtype=jnp.float32) * 0.1
    bias = jax.random.normal(k_b, (Cout,), dtype=jnp.float32) * 0.1

    feats = [
        jax.random.normal(k_x1, (N, Cin, H1, W1), dtype=jnp.float32),
        jax.random.normal(k_x2, (N, Cin, H2, W2), dtype=jnp.float32),
    ]

    outs = rpn_feat_forward(feats, weight, bias)
    outs = [jax.block_until_ready(o) for o in outs]

    # Correctness check against the XLA conv reference.
    # bf16 MXU inputs with f32 accumulation -> loosened tolerance vs the f32 reference.
    for feat, out in zip(feats, outs):
        ref = _reference(feat, weight, bias)
        assert out.shape == ref.shape, (out.shape, ref.shape)
        assert jnp.allclose(out, ref, atol=5e-2, rtol=5e-2), \
            float(jnp.max(jnp.abs(out - ref)))

    print("KERNEL_OK")
</pallas_src>

<mosaic_0001>
module attributes {stable_mosaic.version = 11 : i64} {
  func.func @_rpn_conv_relu_kernel(%arg0: i32, %arg1: i32, %arg2: memref<1x1x4x162xbf16, #tpu.memory_space<vmem>>, %arg3: memref<3x3x8x4xbf16, #tpu.memory_space<vmem>>, %arg4: memref<8x1xf32, #tpu.memory_space<vmem>>, %arg5: memref<2x128xbf16, #tpu.memory_space<vmem>>, %arg6: memref<1x8x128xf32, #tpu.memory_space<vmem>>) attributes {dimension_semantics = [#tpu.dimension_semantics<parallel>, #tpu.dimension_semantics<parallel>], iteration_bounds = array<i64: 2, 2>, scalar_prefetch = 0 : i64, scratch_operands = 0 : i64, tpu.core_type = #tpu.core_type<tc>, window_params = [{transform_indices = @transform_0, window_bounds = array<i64: 1, 1, 4, 162>}, {pipeline_mode = #tpu.pipeline_mode<synchronous>, transform_indices = @transform_1, window_bounds = array<i64: 3, 3, 8, 4>}, {pipeline_mode = #tpu.pipeline_mode<synchronous>, transform_indices = @transform_2, window_bounds = array<i64: 8, 1>}, {pipeline_mode = #tpu.pipeline_mode<synchronous>, transform_indices = @transform_3, window_bounds = array<i64: 2, 128>}, {transform_indices = @transform_4, window_bounds = array<i64: 1, 8, 128>}]} {
    %c0 = arith.constant 0 : index
    %c0_0 = arith.constant 0 : index
    %c0_1 = arith.constant 0 : index
    %c0_2 = arith.constant 0 : index
    %0 = vector.load %arg2[%c0, %c0_0, %c0_1, %c0_2] : memref<1x1x4x162xbf16, #tpu.memory_space<vmem>>, vector<1x1x4x162xbf16>
    %1 = vector.shape_cast %0 : vector<1x1x4x162xbf16> to vector<4x162xbf16>
    %c0_3 = arith.constant 0 : index
    %c0_4 = arith.constant 0 : index
    %2 = vector.load %arg5[%c0_3, %c0_4] : memref<2x128xbf16, #tpu.memory_space<vmem>>, vector<1x128xbf16>
    %c1 = arith.constant 1 : index
    %c0_5 = arith.constant 0 : index
    %3 = vector.load %arg5[%c1, %c0_5] : memref<2x128xbf16, #tpu.memory_space<vmem>>, vector<1x128xbf16>
    %cst = arith.constant 0.000000e+00 : f32
    %4 = vector.broadcast %cst : f32 to vector<8x128xf32>
    %5 = vector.extract_strided_slice %1 {offsets = [0, 0], sizes = [4, 128], strides = [1, 1]} : vector<4x162xbf16> to vector<4x128xbf16>
    %6 = vector.broadcast %2 : vector<1x128xbf16> to vector<4x128xbf16>
    %7 = arith.mulf %5, %6 : vector<4x128xbf16>
    %c0_6 = arith.constant 0 : index
    %c0_7 = arith.constant 0 : index
    %c0_8 = arith.constant 0 : index
    %c0_9 = arith.constant 0 : index
    %8 = vector.load %arg3[%c0_6, %c0_7, %c0_8, %c0_9] : memref<3x3x8x4xbf16, #tpu.memory_space<vmem>>, vector<1x1x8x4xbf16>
    %9 = vector.shape_cast %8 : vector<1x1x8x4xbf16> to vector<8x4xbf16>
    %cst_10 = arith.constant dense<0.000000e+00> : vector<8x128xf32>
    %10 = tpu.matmul %9, %7, %cst_10 {dimension_numbers = #tpu.dot_dimension_numbers<[1], [0], [0], [1], [0, 0, 1, 1], [], []>} : vector<8x4xbf16>, vector<4x128xbf16>, vector<8x128xf32> -> vector<8x128xf32>
    %11 = arith.addf %4, %10 : vector<8x128xf32>
    %12 = vector.extract_strided_slice %1 {offsets = [0, 1], sizes = [4, 128], strides = [1, 1]} : vector<4x162xbf16> to vector<4x128xbf16>
    %c0_11 = arith.constant 0 : index
    %c1_12 = arith.constant 1 : index
    %c0_13 = arith.constant 0 : index
    %c0_14 = arith.constant 0 : index
    %13 = vector.load %arg3[%c0_11, %c1_12, %c0_13, %c0_14] : memref<3x3x8x4xbf16, #tpu.memory_space<vmem>>, vector<1x1x8x4xbf16>
    %14 = vector.shape_cast %13 : vector<1x1x8x4xbf16> to vector<8x4xbf16>
    %cst_15 = arith.constant dense<0.000000e+00> : vector<8x128xf32>
    %15 = tpu.matmul %14, %12, %cst_15 {dimension_numbers = #tpu.dot_dimension_numbers<[1], [0], [0], [1], [0, 0, 1, 1], [], []>} : vector<8x4xbf16>, vector<4x128xbf16>, vector<8x128xf32> -> vector<8x128xf32>
    %16 = arith.addf %11, %15 : vector<8x128xf32>
    %17 = vector.extract_strided_slice %1 {offsets = [0, 2], sizes = [4, 128], strides = [1, 1]} : vector<4x162xbf16> to vector<4x128xbf16>
    %18 = vector.broadcast %3 : vector<1x128xbf16> to vector<4x128xbf16>
    %19 = arith.mulf %17, %18 : vector<4x128xbf16>
    %c0_16 = arith.constant 0 : index
    %c2 = arith.constant 2 : index
    %c0_17 = arith.constant 0 : index
    %c0_18 = arith.constant 0 : index
    %20 = vector.load %arg3[%c0_16, %c2, %c0_17, %c0_18] : memref<3x3x8x4xbf16, #tpu.memory_space<vmem>>, vector<1x1x8x4xbf16>
    %21 = vector.shape_cast %20 : vector<1x1x8x4xbf16> to vector<8x4xbf16>
    %cst_19 = arith.constant dense<0.000000e+00> : vector<8x128xf32>
    %22 = tpu.matmul %21, %19, %cst_19 {dimension_numbers = #tpu.dot_dimension_numbers<[1], [0], [0], [1], [0, 0, 1, 1], [], []>} : vector<8x4xbf16>, vector<4x128xbf16>, vector<8x128xf32> -> vector<8x128xf32>
    %23 = arith.addf %16, %22 : vector<8x128xf32>
    %24 = vector.extract_strided_slice %1 {offsets = [0, 16], sizes = [4, 128], strides = [1, 1]} : vector<4x162xbf16> to vector<4x128xbf16>
    %25 = vector.broadcast %2 : vector<1x128xbf16> to vector<4x128xbf16>
    %26 = arith.mulf %24, %25 : vector<4x128xbf16>
    %c1_20 = arith.constant 1 : index
    %c0_21 = arith.constant 0 : index
    %c0_22 = arith.constant 0 : index
    %c0_23 = arith.constant 0 : index
    %27 = vector.load %arg3[%c1_20, %c0_21, %c0_22, %c0_23] : memref<3x3x8x4xbf16, #tpu.memory_space<vmem>>, vector<1x1x8x4xbf16>
    %28 = vector.shape_cast %27 : vector<1x1x8x4xbf16> to vector<8x4xbf16>
    %cst_24 = arith.constant dense<0.000000e+00> : vector<8x128xf32>
    %29 = tpu.matmul %28, %26, %cst_24 {dimension_numbers = #tpu.dot_dimension_numbers<[1], [0], [0], [1], [0, 0, 1, 1], [], []>} : vector<8x4xbf16>, vector<4x128xbf16>, vector<8x128xf32> -> vector<8x128xf32>
    %30 = arith.addf %23, %29 : vector<8x128xf32>
    %31 = vector.extract_strided_slice %1 {offsets = [0, 17], sizes = [4, 128], strides = [1, 1]} : vector<4x162xbf16> to vector<4x128xbf16>
    %c1_25 = arith.constant 1 : index
    %c1_26 = arith.constant 1 : index
    %c0_27 = arith.constant 0 : index
    %c0_28 = arith.constant 0 : index
    %32 = vector.load %arg3[%c1_25, %c1_26, %c0_27, %c0_28] : memref<3x3x8x4xbf16, #tpu.memory_space<vmem>>, vector<1x1x8x4xbf16>
    %33 = vector.shape_cast %32 : vector<1x1x8x4xbf16> to vector<8x4xbf16>
    %cst_29 = arith.constant dense<0.000000e+00> : vector<8x128xf32>
    %34 = tpu.matmul %33, %31, %cst_29 {dimension_numbers = #tpu.dot_dimension_numbers<[1], [0], [0], [1], [0, 0, 1, 1], [], []>} : vector<8x4xbf16>, vector<4x128xbf16>, vector<8x128xf32> -> vector<8x128xf32>
    %35 = arith.addf %30, %34 : vector<8x128xf32>
    %36 = vector.extract_strided_slice %1 {offsets = [0, 18], sizes = [4, 128], strides = [1, 1]} : vector<4x162xbf16> to vector<4x128xbf16>
    %37 = vector.broadcast %3 : vector<1x128xbf16> to vector<4x128xbf16>
    %38 = arith.mulf %36, %37 : vector<4x128xbf16>
    %c1_30 = arith.constant 1 : index
    %c2_31 = arith.constant 2 : index
    %c0_32 = arith.constant 0 : index
    %c0_33 = arith.constant 0 : index
    %39 = vector.load %arg3[%c1_30, %c2_31, %c0_32, %c0_33] : memref<3x3x8x4xbf16, #tpu.memory_space<vmem>>, vector<1x1x8x4xbf16>
    %40 = vector.shape_cast %39 : vector<1x1x8x4xbf16> to vector<8x4xbf16>
    %cst_34 = arith.constant dense<0.000000e+00> : vector<8x128xf32>
    %41 = tpu.matmul %40, %38, %cst_34 {dimension_numbers = #tpu.dot_dimension_numbers<[1], [0], [0], [1], [0, 0, 1, 1], [], []>} : vector<8x4xbf16>, vector<4x128xbf16>, vector<8x128xf32> -> vector<8x128xf32>
    %42 = arith.addf %35, %41 : vector<8x128xf32>
    %43 = vector.extract_strided_slice %1 {offsets = [0, 32], sizes = [4, 128], strides = [1, 1]} : vector<4x162xbf16> to vector<4x128xbf16>
    %44 = vector.broadcast %2 : vector<1x128xbf16> to vector<4x128xbf16>
    %45 = arith.mulf %43, %44 : vector<4x128xbf16>
    %c2_35 = arith.constant 2 : index
    %c0_36 = arith.constant 0 : index
    %c0_37 = arith.constant 0 : index
    %c0_38 = arith.constant 0 : index
    %46 = vector.load %arg3[%c2_35, %c0_36, %c0_37, %c0_38] : memref<3x3x8x4xbf16, #tpu.memory_space<vmem>>, vector<1x1x8x4xbf16>
    %47 = vector.shape_cast %46 : vector<1x1x8x4xbf16> to vector<8x4xbf16>
    %cst_39 = arith.constant dense<0.000000e+00> : vector<8x128xf32>
    %48 = tpu.matmul %47, %45, %cst_39 {dimension_numbers = #tpu.dot_dimension_numbers<[1], [0], [0], [1], [0, 0, 1, 1], [], []>} : vector<8x4xbf16>, vector<4x128xbf16>, vector<8x128xf32> -> vector<8x128xf32>
    %49 = arith.addf %42, %48 : vector<8x128xf32>
    %50 = vector.extract_strided_slice %1 {offsets = [0, 33], sizes = [4, 128], strides = [1, 1]} : vector<4x162xbf16> to vector<4x128xbf16>
    %c2_40 = arith.constant 2 : index
    %c1_41 = arith.constant 1 : index
    %c0_42 = arith.constant 0 : index
    %c0_43 = arith.constant 0 : index
    %51 = vector.load %arg3[%c2_40, %c1_41, %c0_42, %c0_43] : memref<3x3x8x4xbf16, #tpu.memory_space<vmem>>, vector<1x1x8x4xbf16>
    %52 = vector.shape_cast %51 : vector<1x1x8x4xbf16> to vector<8x4xbf16>
    %cst_44 = arith.constant dense<0.000000e+00> : vector<8x128xf32>
    %53 = tpu.matmul %52, %50, %cst_44 {dimension_numbers = #tpu.dot_dimension_numbers<[1], [0], [0], [1], [0, 0, 1, 1], [], []>} : vector<8x4xbf16>, vector<4x128xbf16>, vector<8x128xf32> -> vector<8x128xf32>
    %54 = arith.addf %49, %53 : vector<8x128xf32>
    %55 = vector.extract_strided_slice %1 {offsets = [0, 34], sizes = [4, 128], strides = [1, 1]} : vector<4x162xbf16> to vector<4x128xbf16>
    %56 = vector.broadcast %3 : vector<1x128xbf16> to vector<4x128xbf16>
    %57 = arith.mulf %55, %56 : vector<4x128xbf16>
    %c2_45 = arith.constant 2 : index
    %c2_46 = arith.constant 2 : index
    %c0_47 = arith.constant 0 : index
    %c0_48 = arith.constant 0 : index
    %58 = vector.load %arg3[%c2_45, %c2_46, %c0_47, %c0_48] : memref<3x3x8x4xbf16, #tpu.memory_space<vmem>>, vector<1x1x8x4xbf16>
    %59 = vector.shape_cast %58 : vector<1x1x8x4xbf16> to vector<8x4xbf16>
    %cst_49 = arith.constant dense<0.000000e+00> : vector<8x128xf32>
    %60 = tpu.matmul %59, %57, %cst_49 {dimension_numbers = #tpu.dot_dimension_numbers<[1], [0], [0], [1], [0, 0, 1, 1], [], []>} : vector<8x4xbf16>, vector<4x128xbf16>, vector<8x128xf32> -> vector<8x128xf32>
    %61 = arith.addf %54, %60 : vector<8x128xf32>
    %c0_50 = arith.constant 0 : index
    %c0_51 = arith.constant 0 : index
    %62 = vector.load %arg4[%c0_50, %c0_51] : memref<8x1xf32, #tpu.memory_space<vmem>>, vector<8x1xf32>
    %63 = vector.broadcast %62 : vector<8x1xf32> to vector<8x128xf32>
    %64 = arith.addf %61, %63 : vector<8x128xf32>
    %cst_52 = arith.constant 0.000000e+00 : f32
    %65 = vector.broadcast %cst_52 : f32 to vector<8x128xf32>
    %66 = arith.maximumf %64, %65 : vector<8x128xf32>
    %c0_53 = arith.constant 0 : index
    %c0_54 = arith.constant 0 : index
    %c0_55 = arith.constant 0 : index
    %67 = vector.load %arg6[%c0_53, %c0_54, %c0_55] : memref<1x8x128xf32, #tpu.memory_space<vmem>>, vector<1x8x128xf32>
    %68 = vector.shape_cast %67 : vector<1x8x128xf32> to vector<8x128xf32>
    %69 = vector.shape_cast %66 : vector<8x128xf32> to vector<1x8x128xf32>
    tpu.vector_store %arg6[%c0_53, %c0_54, %c0_55], %69 {strides = array<i32>} : memref<1x8x128xf32, #tpu.memory_space<vmem>>, vector<1x8x128xf32>,
    return
  }
  func.func @transform_0(%arg0: i32, %arg1: i32) -> (i32, i32, i32, i32) {
    %c0_i32 = arith.constant 0 : i32
    %c0_i32_0 = arith.constant 0 : i32
    %c0_i32_1 = arith.constant 0 : i32
    return %arg0, %arg1, %c0_i32, %c0_i32_0 : i32, i32, i32, i32
  }
  func.func @transform_1(%arg0: i32, %arg1: i32) -> (i32, i32, i32, i32) {
    %c0_i32 = arith.constant 0 : i32
    %c0_i32_0 = arith.constant 0 : i32
    %c0_i32_1 = arith.constant 0 : i32
    %c0_i32_2 = arith.constant 0 : i32
    %c0_i32_3 = arith.constant 0 : i32
    return %c0_i32, %c0_i32_0, %c0_i32_1, %c0_i32_2 : i32, i32, i32, i32
  }
  func.func @transform_2(%arg0: i32, %arg1: i32) -> (i32, i32) {
    %c0_i32 = arith.constant 0 : i32
    %c0_i32_0 = arith.constant 0 : i32
    %c0_i32_1 = arith.constant 0 : i32
    return %c0_i32, %c0_i32_0 : i32, i32
  }
  func.func @transform_3(%arg0: i32, %arg1: i32) -> (i32, i32) {
    %c0_i32 = arith.constant 0 : i32
    %c0_i32_0 = arith.constant 0 : i32
    %c0_i32_1 = arith.constant 0 : i32
    return %c0_i32, %c0_i32_0 : i32, i32
  }
  func.func @transform_4(%arg0: i32, %arg1: i32) -> (i32, i32, i32) {
    %c0_i32 = arith.constant 0 : i32
    %c0_i32_0 = arith.constant 0 : i32
    return %arg0, %c0_i32, %arg1 : i32, i32, i32
  }
}

</mosaic_0001>

<llo_original>
// kernel: _rpn_conv_relu_level.1
$region0: #{_rpn_conv_relu_level.1}
  #allocation0 [shape = 'u32[]', space=smem, size = 0x4, offset = 0x4, fixed_abs, tag = 'smem constant byte address 0x4 - core index']
  #allocation1 [shape = 'u32[144,128]{1,0:T(1,128)}', space=vmem, size = 0x12000, scoped, tag = 'internal scratch']
  %s0 = inlined_call_operand.hbm [shape: bf16[2,2,4,162], index: 0, kind: input, shape index: {}]
  %s1 = inlined_call_operand.hbm [shape: bf16[3,3,8,4], index: 1, kind: input, shape index: {}]
  %s2 = inlined_call_operand.hbm [shape: f32[8,1], index: 2, kind: input, shape index: {}]
  %s3 = inlined_call_operand.hbm [shape: bf16[2,128], index: 3, kind: input, shape index: {}]
  %s4 = inlined_call_operand.hbm [shape: f32[2,8,256], index: 4, kind: output, shape index: {}]
  %s5 = sld [smem:[#allocation0]]
  $region65: #{_rpn_conv_relu_level.1} parent=0
    _
  %s7 = ssub.s32 1, %s5
  %s8 = scalar_select 0, %s7, %s5
  $region1: #{_rpn_conv_relu_level.1} parent=0
    #allocation2 [shape = 'u8[4096]{0}', space=vmem, size = 0x1000, scoped, tag = 'input window, operand 0']
    #allocation3 [shape = 's32[2]{0}', space=sflag, size = 0x8, scoped, tag = 'scoped memory for _rpn_conv_relu_level.1']
    #allocation4 [shape = 's32[2]{0}', space=sflag, size = 0x8, scoped, tag = 'scoped memory for _rpn_conv_relu_level.1']
    #allocation5 [shape = 'u8[18432]{0}', space=vmem, size = 0x4800, scoped, tag = 'input window, operand 1, single buffered']
    #allocation6 [shape = 's32[1]{0}', space=sflag, size = 0x4, scoped, tag = 'scoped memory for _rpn_conv_relu_level.1']
    #allocation7 [shape = 'u8[4096]{0}', space=vmem, size = 0x1000, scoped, tag = 'input window, operand 2, single buffered']
    #allocation8 [shape = 'u8[512]{0}', space=vmem, size = 0x400, scoped, tag = 'input window, operand 3, single buffered']
    #allocation9 [shape = 's32[1]{0}', space=sflag, size = 0x4, scoped, tag = 'scoped memory for _rpn_conv_relu_level.1']
    #allocation10 [shape = 'u8[8192]{0}', space=vmem, size = 0x2000, scoped, tag = 'output window, operand 0']
    %9 = vsyncpa [#allocation3], 0
    %s10 = scalar_lea.sflag [#allocation3], 1
    %11 = vsyncpa %s10, 0
    %12 = vsyncpa [#allocation6], 0
    %13 = vsyncpa [#allocation9], 0
    %14 = vsyncpa [#allocation4], 0
    %s15 = scalar_lea.sflag [#allocation4], 1
    %16 = vsyncpa %s15, 0
    loop: start=0, step=1, limit=6
    $region2: #{_rpn_conv_relu_level.1} parent=1 // loop_pre_header
      _
    $region3: #{_rpn_conv_relu_level.1} parent=1 // loop_header
      %s18 = sphi 0, %s22
      %p19 = scmp.ge.s32.totalorder %s18, 6
      %s25 = sphi 0, %s37
      %s26 = sphi 0, %s33
      %s27 = sphi 0, %s25
      %s28 = sphi 0, %s26
      %s29 = sphi 0, %s27
      %s30 = sphi 0, %s28
      %s42 = sphi 0, %s44
      %s45 = sphi 0, %s42
      %s46 = sphi 0, %s45
      %s62 = sphi 0, %s46
      %s66 = sphi 0, %s66
      %s68 = sphi 0, %s66
      %s69 = sphi 0, %s68
      %s83 = sphi 0, %s69
      %s87 = sphi 0, %s87
      %s89 = sphi 0, %s87
      %s90 = sphi 0, %s89
      %s104 = sphi 0, %s90
      %s108 = sphi 0, %s108
      %s110 = sphi 0, %s108
      %s111 = sphi 0, %s110
      %s125 = sphi 0, %s111
      %s133 = sphi 0, %s135
      %s136 = sphi 0, %s133
      %s137 = sphi 0, %s136
      %s153 = sphi 0, %s137
    $region4: #{_rpn_conv_relu_level.1} parent=1 // loop_header_branch
      %21 = sbr.rel (%p19) target = $region8
    $region5: #{_rpn_conv_relu_level.1} parent=1 // loop_body
      %s23 = ssub.s32 %s18, 1
      %s24 = ssub.s32 %s18, 2
      %s31 = sadd.s32 1, %s26
      %p32 = scmp.ge.s32.totalorder %s31, 2
      %s33 = scalar_select %p32, 0, %s31
      %s34 = sadd.s32 1, %s25
      %s35 = scalar_select %p32, %s34, %s25
      %p36 = scmp.ge.s32.totalorder %s35, 2
      %s37 = scalar_select %p36, 0, %s35
      %s38 = ssub.s32 %s25, %s37
      %s39 = ssub.s32 %s26, %s33
      %s40 = sor.u32 %s38, %s39
      %p41 = scmp.eq.s32.totalorder %s40, 0
      %s43 = sadd.s32 %s42, 1
      %s44 = scalar_select %p41, %s42, %s43
      %p47 = pneg %p41
      %p48 = scmp.eq.s32.totalorder %s18, 3
      %p49 = por %p47, %p48
      %p50 = scmp.ne.s32.totalorder %s42, %s45
      %p51 = scmp.eq.s32.totalorder %s18, 0
      %p52 = por %p50, %p51
      %p53 = scmp.ne.s32.totalorder %s42, %s45
      %p54 = scmp.eq.s32.totalorder %s23, 3
      %p55 = por %p53, %p54
      %p56 = scmp.ne.s32.totalorder %s45, %s46
      %p57 = scmp.eq.s32.totalorder %s23, 0
      %p58 = por %p56, %p57
      %p59 = scmp.ne.s32.totalorder %s45, %s46
      %p60 = scmp.eq.s32.totalorder %s24, 3
      %p61 = por %p59, %p60
      %p63 = scmp.ne.s32.totalorder %s46, %s62
      %p64 = scmp.eq.s32.totalorder %s24, 0
      %p65 = por %p63, %p64
      %s67 = sadd.s32 %s66, 1
      %p70 = scmp.eq.s32.totalorder %s18, 3
      %p71 = scmp.ne.s32.totalorder %s66, %s68
      %p72 = scmp.eq.s32.totalorder %s18, 0
      %p73 = por %p71, %p72
      %p74 = scmp.ne.s32.totalorder %s66, %s68
      %p75 = scmp.eq.s32.totalorder %s23, 3
      %p76 = por %p74, %p75
      %p77 = scmp.ne.s32.totalorder %s68, %s69
      %p78 = scmp.eq.s32.totalorder %s23, 0
      %p79 = por %p77, %p78
      %p80 = scmp.ne.s32.totalorder %s68, %s69
      %p81 = scmp.eq.s32.totalorder %s24, 3
      %p82 = por %p80, %p81
      %p84 = scmp.ne.s32.totalorder %s69, %s83
      %p85 = scmp.eq.s32.totalorder %s24, 0
      %p86 = por %p84, %p85
      %s88 = sadd.s32 %s87, 1
      %p91 = scmp.eq.s32.totalorder %s18, 3
      %p92 = scmp.ne.s32.totalorder %s87, %s89
      %p93 = scmp.eq.s32.totalorder %s18, 0
      %p94 = por %p92, %p93
      %p95 = scmp.ne.s32.totalorder %s87, %s89
      %p96 = scmp.eq.s32.totalorder %s23, 3
      %p97 = por %p95, %p96
      %p98 = scmp.ne.s32.totalorder %s89, %s90
      %p99 = scmp.eq.s32.totalorder %s23, 0
      %p100 = por %p98, %p99
      %p101 = scmp.ne.s32.totalorder %s89, %s90
      %p102 = scmp.eq.s32.totalorder %s24, 3
      %p103 = por %p101, %p102
      %p105 = scmp.ne.s32.totalorder %s90, %s104
      %p106 = scmp.eq.s32.totalorder %s24, 0
      %p107 = por %p105, %p106
      %s109 = sadd.s32 %s108, 1
      %p112 = scmp.eq.s32.totalorder %s18, 3
      %p113 = scmp.ne.s32.totalorder %s108, %s110
      %p114 = scmp.eq.s32.totalorder %s18, 0
      %p115 = por %p113, %p114
      %p116 = scmp.ne.s32.totalorder %s108, %s110
      %p117 = scmp.eq.s32.totalorder %s23, 3
      %p118 = por %p116, %p117
      %p119 = scmp.ne.s32.totalorder %s110, %s111
      %p120 = scmp.eq.s32.totalorder %s23, 0
      %p121 = por %p119, %p120
      %p122 = scmp.ne.s32.totalorder %s110, %s111
      %p123 = scmp.eq.s32.totalorder %s24, 3
      %p124 = por %p122, %p123
      %p126 = scmp.ne.s32.totalorder %s111, %s125
      %p127 = scmp.eq.s32.totalorder %s24, 0
      %p128 = por %p126, %p127
      %s129 = ssub.s32 %s25, %s37
      %s130 = ssub.s32 %s26, %s33
      %s131 = sor.u32 %s129, %s130
      %p132 = scmp.eq.s32.totalorder %s131, 0
      %s134 = sadd.s32 %s133, 1
      %s135 = scalar_select %p132, %s133, %s134
      %p138 = pneg %p132
      %p139 = scmp.eq.s32.totalorder %s18, 3
      %p140 = por %p138, %p139
      %p141 = scmp.ne.s32.totalorder %s133, %s136
      %p142 = scmp.eq.s32.totalorder %s18, 0
      %p143 = por %p141, %p142
      %p144 = scmp.ne.s32.totalorder %s133, %s136
      %p145 = scmp.eq.s32.totalorder %s23, 3
      %p146 = por %p144, %p145
      %p147 = scmp.ne.s32.totalorder %s136, %s137
      %p148 = scmp.eq.s32.totalorder %s23, 0
      %p149 = por %p147, %p148
      %p150 = scmp.ne.s32.totalorder %s136, %s137
      %p151 = scmp.eq.s32.totalorder %s24, 3
      %p152 = por %p150, %p151
      %p154 = scmp.ne.s32.totalorder %s137, %s153
      %p155 = scmp.eq.s32.totalorder %s24, 0
      %p156 = por %p154, %p155
      %p157 = scmp.le.s32.totalorder 1, %s18
      %p158 = scmp.lt.s32.totalorder %s18, 5
      %p159 = pnand %p157, %p158
      %p160 = pneg %p159
      // Predicated region
      $region9: #{_rpn_conv_relu_level.1} parent=5 // pred_check
        _
      $region10: #{_rpn_conv_relu_level.1} parent=5 // pred_check_branch
        %162 = sbr.rel (%p159) target = $region12
      $region11: #{_rpn_conv_relu_level.1} parent=5 // pred_region
        %s163 = ssub.s32 %s18, 1
        // Predicated region
        $region13: #{_rpn_conv_relu_level.1} parent=11 // pred_check
          %p164 = pneg %p79
        $region14: #{_rpn_conv_relu_level.1} parent=11 // pred_check_branch
          %166 = sbr.rel (%p164) target = $region16
        $region15: #{_rpn_conv_relu_level.1} parent=11 // pred_region
          %s168 = ssub.s32 576, 576
          %169 = vsyncadd [#allocation6], %s168
          %s170 = sshll.u32 [#allocation5], 4
          %s171 = int_to_ptr.vmem [resolvable:$true] %s170
          %176 = dma.hbm_to_vmem [thread:$0]  %s1, 576, %s171, [#allocation6], 64, 64, 4
        $region16: #{_rpn_conv_relu_level.1} parent=11 // pred_fallthru
          _
        // Predicated region
        $region17: #{_rpn_conv_relu_level.1} parent=11 // pred_check
          %p177 = pneg %p100
        $region18: #{_rpn_conv_relu_level.1} parent=11 // pred_check_branch
          %179 = sbr.rel (%p177) target = $region20
        $region19: #{_rpn_conv_relu_level.1} parent=11 // pred_region
          %s181 = ssub.s32 128, 128
          %182 = vsyncadd [#allocation6], %s181
          %s184 = sshll.u32 [#allocation7], 4
          %s185 = int_to_ptr.vmem [resolvable:$true] %s184
          %187 = dma.hbm_to_vmem [thread:$0]  %s2, 128, %s185, [#allocation6]
        $region20: #{_rpn_conv_relu_level.1} parent=11 // pred_fallthru
          _
        // Predicated region
        $region21: #{_rpn_conv_relu_level.1} parent=11 // pred_check
          %p188 = pneg %p121
        $region22: #{_rpn_conv_relu_level.1} parent=11 // pred_check_branch
          %190 = sbr.rel (%p188) target = $region24
        $region23: #{_rpn_conv_relu_level.1} parent=11 // pred_region
          %s192 = ssub.s32 16, 16
          %193 = vsyncadd [#allocation9], %s192
          %s195 = sshll.u32 [#allocation8], 4
          %s196 = int_to_ptr.vmem [resolvable:$true] %s195
          %198 = dma.hbm_to_vmem [thread:$0]  %s3, 16, %s196, [#allocation9]
        $region24: #{_rpn_conv_relu_level.1} parent=11 // pred_fallthru
          _
      $region12: #{_rpn_conv_relu_level.1} parent=5 // pred_fallthru
        _
      %p199 = scmp.lt.s32.totalorder %s18, 4
      // Predicated region
      $region25: #{_rpn_conv_relu_level.1} parent=5 // pred_check
        %p200 = pneg %p199
      $region26: #{_rpn_conv_relu_level.1} parent=5 // pred_check_branch
        %202 = sbr.rel (%p200) target = $region28
      $region27: #{_rpn_conv_relu_level.1} parent=5 // pred_region
        // Predicated region
        $region29: #{_rpn_conv_relu_level.1} parent=27 // pred_check
          %p203 = pneg %p52
        $region30: #{_rpn_conv_relu_level.1} parent=27 // pred_check_branch
          %205 = sbr.rel (%p203) target = $region32
        $region31: #{_rpn_conv_relu_level.1} parent=27 // pred_region
          %s206 = sand.u32 %s42, 1
          %s207 = scalar_lea.sflag [#allocation3], %s206
          %s208 = sand.u32 %s42, 1
          %s209 = smul.addr %s208, 4
          %s210 = scalar_lea.vmem [#allocation2], %s209
          %s212 = ssub.s32 64, 64
          %213 = vsyncadd %s207, %s212
          %s214 = smul.addr %s26, 2
          %s215 = smul.addr %s25, 4
          %s216 = sadd.s32 %s214, %s215
          %s217 = smul.addr %s216, 32
          %s218 = scalar_lea.hbm %s0, %s217
          %s220 = sshll.u32 %s210, 4
          %s221 = int_to_ptr.vmem [resolvable:$true] %s220
          %223 = dma.hbm_to_vmem [thread:$0]  %s218, 64, %s221, %s207
        $region32: #{_rpn_conv_relu_level.1} parent=27 // pred_fallthru
          _
      $region28: #{_rpn_conv_relu_level.1} parent=5 // pred_fallthru
        _
      %p224 = scmp.le.s32.totalorder 1, %s18
      %p225 = scmp.lt.s32.totalorder %s18, 5
      %p226 = pnand %p224, %p225
      %p227 = pneg %p226
      // Predicated region
      $region33: #{_rpn_conv_relu_level.1} parent=5 // pred_check
        _
      $region34: #{_rpn_conv_relu_level.1} parent=5 // pred_check_branch
        %229 = sbr.rel (%p226) target = $region36
      $region35: #{_rpn_conv_relu_level.1} parent=5 // pred_region
        %s230 = ssub.s32 %s18, 1
        %s231 = sand.u32 %s45, 1
        %s232 = scalar_lea.sflag [#allocation3], %s231
        %s233 = sand.u32 %s45, 1
        %s234 = smul.addr %s233, 4
        %s235 = scalar_lea.vmem [#allocation2], %s234
        // Predicated region
        $region37: #{_rpn_conv_relu_level.1} parent=35 // pred_check
          %p236 = pneg %p58
        $region38: #{_rpn_conv_relu_level.1} parent=35 // pred_check_branch
          %238 = sbr.rel (%p236) target = $region40
        $region39: #{_rpn_conv_relu_level.1} parent=35 // pred_region
          %239 = dma.done %s232, 64
        $region40: #{_rpn_conv_relu_level.1} parent=35 // pred_fallthru
          _
        // Predicated region
        $region41: #{_rpn_conv_relu_level.1} parent=35 // pred_check
          %p240 = pneg %p79
        $region42: #{_rpn_conv_relu_level.1} parent=35 // pred_check_branch
          %242 = sbr.rel (%p240) target = $region44
        $region43: #{_rpn_conv_relu_level.1} parent=35 // pred_region
          %243 = dma.done [#allocation6], 576
        $region44: #{_rpn_conv_relu_level.1} parent=35 // pred_fallthru
          _
        // Predicated region
        $region45: #{_rpn_conv_relu_level.1} parent=35 // pred_check
          %p244 = pneg %p100
        $region46: #{_rpn_conv_relu_level.1} parent=35 // pred_check_branch
          %246 = sbr.rel (%p244) target = $region48
        $region47: #{_rpn_conv_relu_level.1} parent=35 // pred_region
          %247 = dma.done [#allocation6], 128
        $region48: #{_rpn_conv_relu_level.1} parent=35 // pred_fallthru
          _
        // Predicated region
        $region49: #{_rpn_conv_relu_level.1} parent=35 // pred_check
          %p248 = pneg %p121
        $region50: #{_rpn_conv_relu_level.1} parent=35 // pred_check_branch
          %250 = sbr.rel (%p248) target = $region52
        $region51: #{_rpn_conv_relu_level.1} parent=35 // pred_region
          %251 = dma.done [#allocation9], 16
        $region52: #{_rpn_conv_relu_level.1} parent=35 // pred_fallthru
          _
        %s252 = sand.u32 %s45, 1
        %s253 = scalar_lea.sflag [#allocation3], %s252
        %s254 = sand.u32 %s45, 1
        %s255 = smul.addr %s254, 4
        %s256 = scalar_lea.vmem [#allocation2], %s255
        %p257 = pneg %p58
        %p258 = pneg %p55
        %p259 = pneg %p79
        %p260 = pneg %p76
        %p261 = pneg %p100
        %p262 = pneg %p97
        %p263 = pneg %p121
        %p264 = pneg %p118
        %p265 = pneg %p149
        %p266 = pneg %p146
        %s267 = sand.u32 %s136, 1
        %s268 = scalar_lea.sflag [#allocation4], %s267
        %s269 = sand.u32 %s136, 1
        %s270 = smul.addr %s269, 8
        %s271 = scalar_lea.vmem [#allocation10], %s270
        %v273 = vld [vmem:[%s235] sm:$0xf]
        %v274 = vld [vmem:[#allocation8] sm:$0x1]
        %v276 = vpack.i.b16 %v274, %v274
        %v278 = vlaneseq
        %v279 = vshrl.u32 %v278, 7
        %v280 = vsub.s32 0, %v279
        %v281 = vrot.slane %v276, %v280
        %v282 = vmul.bf16 %v273, %v281
        %v283 = vld [vmem:[#allocation5] sm:$0xf]
        %s284 = scalar_lea.vmem [#allocation5], 4
        %v285 = vld [vmem:[%s284] sm:$0xf]
        %v288 = vunpack.c.l.s4 1983009808
        %v289 = vunpack.c.0.s8 %v288
        %v290 = vlaneseq
        %v291 = vshrl.u32 %v290, 7
        %v292 = vsub.s32 %v289, %v291
        %v293 = vrot.slane %v273, %v292
        %v294 = vcombine.high %v293, %v293
        %295 = vrot.lane.b32.xlu0 %v293, 127
        %v296 = vpop.permute.xlu0 %295
        %297 = vrot.lane.b32.xlu0 %v294, 127
        %v298 = vpop.permute.xlu0 %297
        %vm299 = vcmask 1039360
        %v300 = vsel %vm299, %v296, %v298
        %vm301 = vcmask 31744
        %v303 = vsel %vm301, %v285, 0
        %vm305 = vcmask 1041408
        %v307 = vsel %vm305, %v300, 0
        %309 = vmatprep.subr.bf16.mxu0 0
        %310 = vmatpush1.bf16.msra.mxu0 %v307
        %311 = vmatprep.subr.bf16.mxu0 0
        %312 = vmatpush1.bf16.msra.mxu0 0
        %313 = vmatprep.subr.bf16.mxu0 0
        %314 = vmatpush1.bf16.msra.mxu0 0
        %315 = vmatprep.subr.bf16.mxu0 0
        %316 = vmatpush1.bf16.msra.mxu0 0
        %317 = vmatprep.subr.bf16.mxu0 0
        %318 = vmatpush1.bf16.msra.mxu0 0
        %319 = vmatprep.subr.bf16.mxu0 0
        %320 = vmatpush1.bf16.msra.mxu0 0
        %321 = vmatprep.subr.bf16.mxu0 0
        %322 = vmatpush1.bf16.msra.mxu0 0
        %323 = vmatprep.subr.bf16.mxu0 0
        %324 = vmatpush1.bf16.msra.mxu0 0
        %325 = vmatprep.subr.bf16.mxu0 0
        %326 = vmatpush1.bf16.msra.mxu0 0
        %327 = vmatprep.subr.bf16.mxu0 0
        %328 = vmatpush1.bf16.msra.mxu0 0
        %329 = vmatprep.subr.bf16.mxu0 0
        %330 = vmatpush1.bf16.msra.mxu0 0
        %331 = vmatprep.subr.bf16.mxu0 0
        %332 = vmatpush1.bf16.msra.mxu0 0
        %333 = vmatprep.subr.bf16.mxu0 0
        %334 = vmatpush1.bf16.msra.mxu0 0
        %335 = vmatprep.subr.bf16.mxu0 0
        %336 = vmatpush1.bf16.msra.mxu0 0
        %337 = vmatprep.subr.bf16.mxu0 0
        %338 = vmatpush1.bf16.msra.mxu0 0
        %339 = vmatprep.subr.bf16.mxu0 0
        %340 = vmatpush1.bf16.msra.mxu0 0
        %341 = vmatprep.mubr.bf16.mxu0 0
        %342 = vmatmul.mubr.bf16.gmra.mrb[0].mxu0 %v303
        %v343 = vpop.f32.mrb[0].mxu0
        %v344 = vadd.f32 0.0, %v343
        %v345 = vpop.f32.mrb[0].mxu0
        %v346 = vpop.f32.mrb[0].mxu0
        %v347 = vpop.f32.mrb[0].mxu0
        %348 = vdwg.mxu0
        %v350 = vsel %vm301, %v283, 0
        %v353 = vsel %vm305, %v282, 0
        %355 = vmatprep.subr.bf16.mxu0 0
        %356 = vmatpush1.bf16.msra.mxu0 %v353
        %357 = vmatprep.subr.bf16.mxu0 0
        %358 = vmatpush1.bf16.msra.mxu0 0
        %359 = vmatprep.subr.bf16.mxu0 0
        %360 = vmatpush1.bf16.msra.mxu0 0
        %361 = vmatprep.subr.bf16.mxu0 0
        %362 = vmatpush1.bf16.msra.mxu0 0
        %363 = vmatprep.subr.bf16.mxu0 0
        %364 = vmatpush1.bf16.msra.mxu0 0
        %365 = vmatprep.subr.bf16.mxu0 0
        %366 = vmatpush1.bf16.msra.mxu0 0
        %367 = vmatprep.subr.bf16.mxu0 0
        %368 = vmatpush1.bf16.msra.mxu0 0
        %369 = vmatprep.subr.bf16.mxu0 0
        %370 = vmatpush1.bf16.msra.mxu0 0
        %371 = vmatprep.subr.bf16.mxu0 0
        %372 = vmatpush1.bf16.msra.mxu0 0
        %373 = vmatprep.subr.bf16.mxu0 0
        %374 = vmatpush1.bf16.msra.mxu0 0
        %375 = vmatprep.subr.bf16.mxu0 0
        %376 = vmatpush1.bf16.msra.mxu0 0
        %377 = vmatprep.subr.bf16.mxu0 0
        %378 = vmatpush1.bf16.msra.mxu0 0
        %379 = vmatprep.subr.bf16.mxu0 0
        %380 = vmatpush1.bf16.msra.mxu0 0
        %381 = vmatprep.subr.bf16.mxu0 0
        %382 = vmatpush1.bf16.msra.mxu0 0
        %383 = vmatprep.subr.bf16.mxu0 0
        %384 = vmatpush1.bf16.msra.mxu0 0
        %385 = vmatprep.subr.bf16.mxu0 0
        %386 = vmatpush1.bf16.msra.mxu0 0
        %387 = vmatprep.mubr.bf16.mxu0 0
        %388 = vmatmul.mubr.bf16.gmra.mrb[0].mxu0 %v350
        %v389 = vpop.f32.mrb[0].mxu0
        %v390 = vadd.f32 %v344, %v389
        %v391 = vpop.f32.mrb[0].mxu0
        %v392 = vpop.f32.mrb[0].mxu0
        %v393 = vpop.f32.mrb[0].mxu0
        %394 = vdwg.mxu0
        %v395 = vshrl.u32 %v274, 16
        %v396 = vpack.i.b16 %v395, %v395
        %v398 = vlaneseq
        %v399 = vshrl.u32 %v398, 7
        %v400 = vsub.s32 0, %v399
        %v401 = vrot.slane %v396, %v400
        %v404 = vunpack.c.l.s4 1983009808
        %v405 = vunpack.c.0.s8 %v404
        %v406 = vlaneseq
        %v407 = vshrl.u32 %v406, 7
        %v408 = vsub.s32 %v405, %v407
        %v409 = vrot.slane %v401, %v408
        %410 = vrot.lane.b32.xlu0 %v409, 2
        %v411 = vpop.permute.xlu0 %410
        %v412 = vrot.slane %v411, 6
        %vm413 = vcmask 15360
        %v414 = vsel %vm413, %v412, %v411
        %v416 = vmul.bf16 %v273, %v414
        %s417 = scalar_lea.vmem [#allocation5], 8
        %v418 = vld [vmem:[%s417] sm:$0xf]
        %v421 = vunpack.c.l.s4 1983009808
        %v422 = vunpack.c.0.s8 %v421
        %v423 = vlaneseq
        %v424 = vshrl.u32 %v423, 7
        %v425 = vsub.s32 %v422, %v424
        %v426 = vrot.slane %v416, %v425
        %v427 = vcombine.high %v426, %v426
        %428 = vrot.lane.b32.xlu0 %v426, 126
        %v429 = vpop.permute.xlu0 %428
        %430 = vrot.lane.b32.xlu0 %v427, 126
        %v431 = vpop.permute.xlu0 %430
        %vm432 = vcmask 1031168
        %v433 = vsel %vm432, %v429, %v431
        %v435 = vsel %vm301, %v418, 0
        %v438 = vsel %vm305, %v433, 0
        %440 = vmatprep.subr.bf16.mxu0 0
        %441 = vmatpush1.bf16.msra.mxu0 %v438
        %442 = vmatprep.subr.bf16.mxu0 0
        %443 = vmatpush1.bf16.msra.mxu0 0
        %444 = vmatprep.subr.bf16.mxu0 0
        %445 = vmatpush1.bf16.msra.mxu0 0
        %446 = vmatprep.subr.bf16.mxu0 0
        %447 = vmatpush1.bf16.msra.mxu0 0
        %448 = vmatprep.subr.bf16.mxu0 0
        %449 = vmatpush1.bf16.msra.mxu0 0
        %450 = vmatprep.subr.bf16.mxu0 0
        %451 = vmatpush1.bf16.msra.mxu0 0
        %452 = vmatprep.subr.bf16.mxu0 0
        %453 = vmatpush1.bf16.msra.mxu0 0
        %454 = vmatprep.subr.bf16.mxu0 0
        %455 = vmatpush1.bf16.msra.mxu0 0
        %456 = vmatprep.subr.bf16.mxu0 0
        %457 = vmatpush1.bf16.msra.mxu0 0
        %458 = vmatprep.subr.bf16.mxu0 0
        %459 = vmatpush1.bf16.msra.mxu0 0
        %460 = vmatprep.subr.bf16.mxu0 0
        %461 = vmatpush1.bf16.msra.mxu0 0
        %462 = vmatprep.subr.bf16.mxu0 0
        %463 = vmatpush1.bf16.msra.mxu0 0
        %464 = vmatprep.subr.bf16.mxu0 0
        %465 = vmatpush1.bf16.msra.mxu0 0
        %466 = vmatprep.subr.bf16.mxu0 0
        %467 = vmatpush1.bf16.msra.mxu0 0
        %468 = vmatprep.subr.bf16.mxu0 0
        %469 = vmatpush1.bf16.msra.mxu0 0
        %470 = vmatprep.subr.bf16.mxu0 0
        %471 = vmatpush1.bf16.msra.mxu0 0
        %472 = vmatprep.mubr.bf16.mxu0 0
        %473 = vmatmul.mubr.bf16.gmra.mrb[0].mxu0 %v435
        %v474 = vpop.f32.mrb[0].mxu0
        %v475 = vadd.f32 0.0, %v474
        %v476 = vpop.f32.mrb[0].mxu0
        %v477 = vpop.f32.mrb[0].mxu0
        %v478 = vpop.f32.mrb[0].mxu0
        %479 = vdwg.mxu0
        %v480 = vadd.f32 %v390, %v475
        %v483 = vunpack.c.l.s4 1983009808
        %v484 = vunpack.c.0.s8 %v483
        %v485 = vlaneseq
        %v486 = vshrl.u32 %v485, 7
        %v487 = vsub.s32 %v484, %v486
        %v488 = vrot.slane %v281, %v487
        %489 = vrot.lane.b32.xlu0 %v488, 16
        %v490 = vpop.permute.xlu0 %489
        %v491 = vrot.slane %v490, 6
        %vm492 = vcmask 130048
        %v493 = vsel %vm492, %v491, %v490
        %v495 = vmul.bf16 %v273, %v493
        %s496 = scalar_lea.vmem [#allocation5], 12
        %v497 = vld [vmem:[%s496] sm:$0xf]
        %v500 = vunpack.c.l.s4 1983009808
        %v501 = vunpack.c.0.s8 %v500
        %v502 = vlaneseq
        %v503 = vshrl.u32 %v502, 7
        %v504 = vsub.s32 %v501, %v503
        %v505 = vrot.slane %v495, %v504
        %v506 = vcombine.high %v505, %v505
        %507 = vrot.lane.b32.xlu0 %v505, 112
        %v508 = vpop.permute.xlu0 %507
        %509 = vrot.lane.b32.xlu0 %v506, 112
        %v510 = vpop.permute.xlu0 %509
        %vm511 = vcmask 916480
        %v512 = vsel %vm511, %v508, %v510
        %v514 = vsel %vm301, %v497, 0
        %v517 = vsel %vm305, %v512, 0
        %519 = vmatprep.subr.bf16.mxu0 0
        %520 = vmatpush1.bf16.msra.mxu0 %v517
        %521 = vmatprep.subr.bf16.mxu0 0
        %522 = vmatpush1.bf16.msra.mxu0 0
        %523 = vmatprep.subr.bf16.mxu0 0
        %524 = vmatpush1.bf16.msra.mxu0 0
        %525 = vmatprep.subr.bf16.mxu0 0
        %526 = vmatpush1.bf16.msra.mxu0 0
        %527 = vmatprep.subr.bf16.mxu0 0
        %528 = vmatpush1.bf16.msra.mxu0 0
        %529 = vmatprep.subr.bf16.mxu0 0
        %530 = vmatpush1.bf16.msra.mxu0 0
        %531 = vmatprep.subr.bf16.mxu0 0
        %532 = vmatpush1.bf16.msra.mxu0 0
        %533 = vmatprep.subr.bf16.mxu0 0
        %534 = vmatpush1.bf16.msra.mxu0 0
        %535 = vmatprep.subr.bf16.mxu0 0
        %536 = vmatpush1.bf16.msra.mxu0 0
        %537 = vmatprep.subr.bf16.mxu0 0
        %538 = vmatpush1.bf16.msra.mxu0 0
        %539 = vmatprep.subr.bf16.mxu0 0
        %540 = vmatpush1.bf16.msra.mxu0 0
        %541 = vmatprep.subr.bf16.mxu0 0
        %542 = vmatpush1.bf16.msra.mxu0 0
        %543 = vmatprep.subr.bf16.mxu0 0
        %544 = vmatpush1.bf16.msra.mxu0 0
        %545 = vmatprep.subr.bf16.mxu0 0
        %546 = vmatpush1.bf16.msra.mxu0 0
        %547 = vmatprep.subr.bf16.mxu0 0
        %548 = vmatpush1.bf16.msra.mxu0 0
        %549 = vmatprep.subr.bf16.mxu0 0
        %550 = vmatpush1.bf16.msra.mxu0 0
        %551 = vmatprep.mubr.bf16.mxu0 0
        %552 = vmatmul.mubr.bf16.gmra.mrb[0].mxu0 %v514
        %v553 = vpop.f32.mrb[0].mxu0
        %v554 = vadd.f32 0.0, %v553
        %v555 = vpop.f32.mrb[0].mxu0
        %v556 = vpop.f32.mrb[0].mxu0
        %v557 = vpop.f32.mrb[0].mxu0
        %558 = vdwg.mxu0
        %v559 = vadd.f32 %v480, %v554
        %s560 = scalar_lea.vmem [#allocation5], 16
        %v561 = vld [vmem:[%s560] sm:$0xf]
        %562 = vrot.lane.b32.xlu0 %v293, 111
        %v563 = vpop.permute.xlu0 %562
        %564 = vrot.lane.b32.xlu0 %v294, 111
        %v565 = vpop.permute.xlu0 %564
        %vm566 = vcmask 908288
        %v567 = vsel %vm566, %v563, %v565
        %v569 = vsel %vm301, %v561, 0
        %v572 = vsel %vm305, %v567, 0
        %574 = vmatprep.subr.bf16.mxu0 0
        %575 = vmatpush1.bf16.msra.mxu0 %v572
        %576 = vmatprep.subr.bf16.mxu0 0
        %577 = vmatpush1.bf16.msra.mxu0 0
        %578 = vmatprep.subr.bf16.mxu0 0
        %579 = vmatpush1.bf16.msra.mxu0 0
        %580 = vmatprep.subr.bf16.mxu0 0
        %581 = vmatpush1.bf16.msra.mxu0 0
        %582 = vmatprep.subr.bf16.mxu0 0
        %583 = vmatpush1.bf16.msra.mxu0 0
        %584 = vmatprep.subr.bf16.mxu0 0
        %585 = vmatpush1.bf16.msra.mxu0 0
        %586 = vmatprep.subr.bf16.mxu0 0
        %587 = vmatpush1.bf16.msra.mxu0 0
        %588 = vmatprep.subr.bf16.mxu0 0
        %589 = vmatpush1.bf16.msra.mxu0 0
        %590 = vmatprep.subr.bf16.mxu0 0
        %591 = vmatpush1.bf16.msra.mxu0 0
        %592 = vmatprep.subr.bf16.mxu0 0
        %593 = vmatpush1.bf16.msra.mxu0 0
        %594 = vmatprep.subr.bf16.mxu0 0
        %595 = vmatpush1.bf16.msra.mxu0 0
        %596 = vmatprep.subr.bf16.mxu0 0
        %597 = vmatpush1.bf16.msra.mxu0 0
        %598 = vmatprep.subr.bf16.mxu0 0
        %599 = vmatpush1.bf16.msra.mxu0 0
        %600 = vmatprep.subr.bf16.mxu0 0
        %601 = vmatpush1.bf16.msra.mxu0 0
        %602 = vmatprep.subr.bf16.mxu0 0
        %603 = vmatpush1.bf16.msra.mxu0 0
        %604 = vmatprep.subr.bf16.mxu0 0
        %605 = vmatpush1.bf16.msra.mxu0 0
        %606 = vmatprep.mubr.bf16.mxu0 0
        %607 = vmatmul.mubr.bf16.gmra.mrb[0].mxu0 %v569
        %v608 = vpop.f32.mrb[0].mxu0
        %v609 = vadd.f32 0.0, %v608
        %v610 = vpop.f32.mrb[0].mxu0
        %v611 = vpop.f32.mrb[0].mxu0
        %v612 = vpop.f32.mrb[0].mxu0
        %613 = vdwg.mxu0
        %v614 = vadd.f32 %v559, %v609
        %615 = vrot.lane.b32.xlu0 %v409, 18
        %v616 = vpop.permute.xlu0 %615
        %v617 = vrot.slane %v616, 6
        %vm618 = vcmask 146432
        %v619 = vsel %vm618, %v617, %v616
        %v621 = vmul.bf16 %v273, %v619
        %s622 = scalar_lea.vmem [#allocation5], 20
        %v623 = vld [vmem:[%s622] sm:$0xf]
        %v626 = vunpack.c.l.s4 1983009808
        %v627 = vunpack.c.0.s8 %v626
        %v628 = vlaneseq
        %v629 = vshrl.u32 %v628, 7
        %v630 = vsub.s32 %v627, %v629
        %v631 = vrot.slane %v621, %v630
        %v632 = vcombine.high %v631, %v631
        %633 = vrot.lane.b32.xlu0 %v631, 110
        %v634 = vpop.permute.xlu0 %633
        %635 = vrot.lane.b32.xlu0 %v632, 110
        %v636 = vpop.permute.xlu0 %635
        %vm637 = vcmask 900096
        %v638 = vsel %vm637, %v634, %v636
        %v640 = vsel %vm301, %v623, 0
        %v643 = vsel %vm305, %v638, 0
        %645 = vmatprep.subr.bf16.mxu0 0
        %646 = vmatpush1.bf16.msra.mxu0 %v643
        %647 = vmatprep.subr.bf16.mxu0 0
        %648 = vmatpush1.bf16.msra.mxu0 0
        %649 = vmatprep.subr.bf16.mxu0 0
        %650 = vmatpush1.bf16.msra.mxu0 0
        %651 = vmatprep.subr.bf16.mxu0 0
        %652 = vmatpush1.bf16.msra.mxu0 0
        %653 = vmatprep.subr.bf16.mxu0 0
        %654 = vmatpush1.bf16.msra.mxu0 0
        %655 = vmatprep.subr.bf16.mxu0 0
        %656 = vmatpush1.bf16.msra.mxu0 0
        %657 = vmatprep.subr.bf16.mxu0 0
        %658 = vmatpush1.bf16.msra.mxu0 0
        %659 = vmatprep.subr.bf16.mxu0 0
        %660 = vmatpush1.bf16.msra.mxu0 0
        %661 = vmatprep.subr.bf16.mxu0 0
        %662 = vmatpush1.bf16.msra.mxu0 0
        %663 = vmatprep.subr.bf16.mxu0 0
        %664 = vmatpush1.bf16.msra.mxu0 0
        %665 = vmatprep.subr.bf16.mxu0 0
        %666 = vmatpush1.bf16.msra.mxu0 0
        %667 = vmatprep.subr.bf16.mxu0 0
        %668 = vmatpush1.bf16.msra.mxu0 0
        %669 = vmatprep.subr.bf16.mxu0 0
        %670 = vmatpush1.bf16.msra.mxu0 0
        %671 = vmatprep.subr.bf16.mxu0 0
        %672 = vmatpush1.bf16.msra.mxu0 0
        %673 = vmatprep.subr.bf16.mxu0 0
        %674 = vmatpush1.bf16.msra.mxu0 0
        %675 = vmatprep.subr.bf16.mxu0 0
        %676 = vmatpush1.bf16.msra.mxu0 0
        %677 = vmatprep.mubr.bf16.mxu0 0
        %678 = vmatmul.mubr.bf16.gmra.mrb[0].mxu0 %v640
        %v679 = vpop.f32.mrb[0].mxu0
        %v680 = vadd.f32 0.0, %v679
        %v681 = vpop.f32.mrb[0].mxu0
        %v682 = vpop.f32.mrb[0].mxu0
        %v683 = vpop.f32.mrb[0].mxu0
        %684 = vdwg.mxu0
        %v685 = vadd.f32 %v614, %v680
        %686 = vrot.lane.b32.xlu0 %v488, 32
        %v687 = vpop.permute.xlu0 %686
        %v688 = vrot.slane %v687, 6
        %vm689 = vcmask 261120
        %v690 = vsel %vm689, %v688, %v687
        %v692 = vmul.bf16 %v273, %v690
        %s693 = scalar_lea.vmem [#allocation5], 24
        %v694 = vld [vmem:[%s693] sm:$0xf]
        %v697 = vunpack.c.l.s4 1983009808
        %v698 = vunpack.c.0.s8 %v697
        %v699 = vlaneseq
        %v700 = vshrl.u32 %v699, 7
        %v701 = vsub.s32 %v698, %v700
        %v702 = vrot.slane %v692, %v701
        %v703 = vcombine.high %v702, %v702
        %704 = vrot.lane.b32.xlu0 %v702, 96
        %v705 = vpop.permute.xlu0 %704
        %706 = vrot.lane.b32.xlu0 %v703, 96
        %v707 = vpop.permute.xlu0 %706
        %vm708 = vcmask 785408
        %v709 = vsel %vm708, %v705, %v707
        %v711 = vsel %vm301, %v694, 0
        %v714 = vsel %vm305, %v709, 0
        %716 = vmatprep.subr.bf16.mxu0 0
        %717 = vmatpush1.bf16.msra.mxu0 %v714
        %718 = vmatprep.subr.bf16.mxu0 0
        %719 = vmatpush1.bf16.msra.mxu0 0
        %720 = vmatprep.subr.bf16.mxu0 0
        %721 = vmatpush1.bf16.msra.mxu0 0
        %722 = vmatprep.subr.bf16.mxu0 0
        %723 = vmatpush1.bf16.msra.mxu0 0
        %724 = vmatprep.subr.bf16.mxu0 0
        %725 = vmatpush1.bf16.msra.mxu0 0
        %726 = vmatprep.subr.bf16.mxu0 0
        %727 = vmatpush1.bf16.msra.mxu0 0
        %728 = vmatprep.subr.bf16.mxu0 0
        %729 = vmatpush1.bf16.msra.mxu0 0
        %730 = vmatprep.subr.bf16.mxu0 0
        %731 = vmatpush1.bf16.msra.mxu0 0
        %732 = vmatprep.subr.bf16.mxu0 0
        %733 = vmatpush1.bf16.msra.mxu0 0
        %734 = vmatprep.subr.bf16.mxu0 0
        %735 = vmatpush1.bf16.msra.mxu0 0
        %736 = vmatprep.subr.bf16.mxu0 0
        %737 = vmatpush1.bf16.msra.mxu0 0
        %738 = vmatprep.subr.bf16.mxu0 0
        %739 = vmatpush1.bf16.msra.mxu0 0
        %740 = vmatprep.subr.bf16.mxu0 0
        %741 = vmatpush1.bf16.msra.mxu0 0
        %742 = vmatprep.subr.bf16.mxu0 0
        %743 = vmatpush1.bf16.msra.mxu0 0
        %744 = vmatprep.subr.bf16.mxu0 0
        %745 = vmatpush1.bf16.msra.mxu0 0
        %746 = vmatprep.subr.bf16.mxu0 0
        %747 = vmatpush1.bf16.msra.mxu0 0
        %748 = vmatprep.mubr.bf16.mxu0 0
        %749 = vmatmul.mubr.bf16.gmra.mrb[0].mxu0 %v711
        %v750 = vpop.f32.mrb[0].mxu0
        %v751 = vadd.f32 0.0, %v750
        %v752 = vpop.f32.mrb[0].mxu0
        %v753 = vpop.f32.mrb[0].mxu0
        %v754 = vpop.f32.mrb[0].mxu0
        %755 = vdwg.mxu0
        %v756 = vadd.f32 %v685, %v751
        %s757 = scalar_lea.vmem [#allocation5], 28
        %v758 = vld [vmem:[%s757] sm:$0xf]
        %759 = vrot.lane.b32.xlu0 %v293, 95
        %v760 = vpop.permute.xlu0 %759
        %761 = vrot.lane.b32.xlu0 %v294, 95
        %v762 = vpop.permute.xlu0 %761
        %vm763 = vcmask 777216
        %v764 = vsel %vm763, %v760, %v762
        %v766 = vsel %vm301, %v758, 0
        %v769 = vsel %vm305, %v764, 0
        %771 = vmatprep.subr.bf16.mxu0 0
        %772 = vmatpush1.bf16.msra.mxu0 %v769
        %773 = vmatprep.subr.bf16.mxu0 0
        %774 = vmatpush1.bf16.msra.mxu0 0
        %775 = vmatprep.subr.bf16.mxu0 0
        %776 = vmatpush1.bf16.msra.mxu0 0
        %777 = vmatprep.subr.bf16.mxu0 0
        %778 = vmatpush1.bf16.msra.mxu0 0
        %779 = vmatprep.subr.bf16.mxu0 0
        %780 = vmatpush1.bf16.msra.mxu0 0
        %781 = vmatprep.subr.bf16.mxu0 0
        %782 = vmatpush1.bf16.msra.mxu0 0
        %783 = vmatprep.subr.bf16.mxu0 0
        %784 = vmatpush1.bf16.msra.mxu0 0
        %785 = vmatprep.subr.bf16.mxu0 0
        %786 = vmatpush1.bf16.msra.mxu0 0
        %787 = vmatprep.subr.bf16.mxu0 0
        %788 = vmatpush1.bf16.msra.mxu0 0
        %789 = vmatprep.subr.bf16.mxu0 0
        %790 = vmatpush1.bf16.msra.mxu0 0
        %791 = vmatprep.subr.bf16.mxu0 0
        %792 = vmatpush1.bf16.msra.mxu0 0
        %793 = vmatprep.subr.bf16.mxu0 0
        %794 = vmatpush1.bf16.msra.mxu0 0
        %795 = vmatprep.subr.bf16.mxu0 0
        %796 = vmatpush1.bf16.msra.mxu0 0
        %797 = vmatprep.subr.bf16.mxu0 0
        %798 = vmatpush1.bf16.msra.mxu0 0
        %799 = vmatprep.subr.bf16.mxu0 0
        %800 = vmatpush1.bf16.msra.mxu0 0
        %801 = vmatprep.subr.bf16.mxu0 0
        %802 = vmatpush1.bf16.msra.mxu0 0
        %803 = vmatprep.mubr.bf16.mxu0 0
        %804 = vmatmul.mubr.bf16.gmra.mrb[0].mxu0 %v766
        %v805 = vpop.f32.mrb[0].mxu0
        %v806 = vadd.f32 0.0, %v805
        %v807 = vpop.f32.mrb[0].mxu0
        %v808 = vpop.f32.mrb[0].mxu0
        %v809 = vpop.f32.mrb[0].mxu0
        %810 = vdwg.mxu0
        %v811 = vadd.f32 %v756, %v806
        %812 = vrot.lane.b32.xlu0 %v409, 34
        %v813 = vpop.permute.xlu0 %812
        %v814 = vrot.slane %v813, 6
        %vm815 = vcmask 277504
        %v816 = vsel %vm815, %v814, %v813
        %v818 = vmul.bf16 %v273, %v816
        %s819 = scalar_lea.vmem [#allocation5], 32
        %v820 = vld [vmem:[%s819] sm:$0xf]
        %v823 = vunpack.c.l.s4 1983009808
        %v824 = vunpack.c.0.s8 %v823
        %v825 = vlaneseq
        %v826 = vshrl.u32 %v825, 7
        %v827 = vsub.s32 %v824, %v826
        %v828 = vrot.slane %v818, %v827
        %v829 = vcombine.high %v828, %v828
        %830 = vrot.lane.b32.xlu0 %v828, 94
        %v831 = vpop.permute.xlu0 %830
        %832 = vrot.lane.b32.xlu0 %v829, 94
        %v833 = vpop.permute.xlu0 %832
        %vm834 = vcmask 769024
        %v835 = vsel %vm834, %v831, %v833
        %v837 = vsel %vm301, %v820, 0
        %v840 = vsel %vm305, %v835, 0
        %842 = vmatprep.subr.bf16.mxu0 0
        %843 = vmatpush1.bf16.msra.mxu0 %v840
        %844 = vmatprep.subr.bf16.mxu0 0
        %845 = vmatpush1.bf16.msra.mxu0 0
        %846 = vmatprep.subr.bf16.mxu0 0
        %847 = vmatpush1.bf16.msra.mxu0 0
        %848 = vmatprep.subr.bf16.mxu0 0
        %849 = vmatpush1.bf16.msra.mxu0 0
        %850 = vmatprep.subr.bf16.mxu0 0
        %851 = vmatpush1.bf16.msra.mxu0 0
        %852 = vmatprep.subr.bf16.mxu0 0
        %853 = vmatpush1.bf16.msra.mxu0 0
        %854 = vmatprep.subr.bf16.mxu0 0
        %855 = vmatpush1.bf16.msra.mxu0 0
        %856 = vmatprep.subr.bf16.mxu0 0
        %857 = vmatpush1.bf16.msra.mxu0 0
        %858 = vmatprep.subr.bf16.mxu0 0
        %859 = vmatpush1.bf16.msra.mxu0 0
        %860 = vmatprep.subr.bf16.mxu0 0
        %861 = vmatpush1.bf16.msra.mxu0 0
        %862 = vmatprep.subr.bf16.mxu0 0
        %863 = vmatpush1.bf16.msra.mxu0 0
        %864 = vmatprep.subr.bf16.mxu0 0
        %865 = vmatpush1.bf16.msra.mxu0 0
        %866 = vmatprep.subr.bf16.mxu0 0
        %867 = vmatpush1.bf16.msra.mxu0 0
        %868 = vmatprep.subr.bf16.mxu0 0
        %869 = vmatpush1.bf16.msra.mxu0 0
        %870 = vmatprep.subr.bf16.mxu0 0
        %871 = vmatpush1.bf16.msra.mxu0 0
        %872 = vmatprep.subr.bf16.mxu0 0
        %873 = vmatpush1.bf16.msra.mxu0 0
        %874 = vmatprep.mubr.bf16.mxu0 0
        %875 = vmatmul.mubr.bf16.gmra.mrb[0].mxu0 %v837
        %v876 = vpop.f32.mrb[0].mxu0
        %v877 = vadd.f32 0.0, %v876
        %v878 = vpop.f32.mrb[0].mxu0
        %v879 = vpop.f32.mrb[0].mxu0
        %v880 = vpop.f32.mrb[0].mxu0
        %881 = vdwg.mxu0
        %v882 = vadd.f32 %v811, %v877
        %v883 = vld [vmem:[#allocation7] sm:$0xff]
        %885 = vset.pattern.permute.xlu0 0
        %886 = vperm.xlu0 %885, %v883
        %v887 = vpop.permute.xlu0 %886
        %v889 = vadd.f32 %v882, %v887
        %v890 = vmax.f32 %v889, 0.0
        %891 = vst [vmem:[%s271] sm:$0xff] %v890
        %s892 = sand.u32 %s136, 1
        %s893 = scalar_lea.sflag [#allocation4], %s892
        %s894 = sand.u32 %s136, 1
        %s895 = smul.addr %s894, 8
        %s896 = scalar_lea.vmem [#allocation10], %s895
        // Predicated region
        $region53: #{_rpn_conv_relu_level.1} parent=35 // pred_check
          %p897 = pneg %p146
        $region54: #{_rpn_conv_relu_level.1} parent=35 // pred_check_branch
          %899 = sbr.rel (%p897) target = $region56
        $region55: #{_rpn_conv_relu_level.1} parent=35 // pred_region
          %s901 = ssub.s32 128, 128
          %902 = vsyncadd %s893, %s901
          %s903 = smul.addr %s27, 2
          %s904 = sadd.s32 %s28, %s903
          %s905 = smul.addr %s904, 128
          %s906 = scalar_lea.hbm %s4, %s905
          %s908 = sshll.u32 %s896, 4
          %s909 = int_to_ptr.vmem [resolvable:$true] %s908
          %911 = dma.vmem_to_hbm [thread:$0]  %s909, 128, %s906, %s893
        $region56: #{_rpn_conv_relu_level.1} parent=35 // pred_fallthru
          _
      $region36: #{_rpn_conv_relu_level.1} parent=5 // pred_fallthru
        _
      %p912 = scmp.le.s32.totalorder 2, %s18
      // Predicated region
      $region57: #{_rpn_conv_relu_level.1} parent=5 // pred_check
        %p913 = pneg %p912
      $region58: #{_rpn_conv_relu_level.1} parent=5 // pred_check_branch
        %915 = sbr.rel (%p913) target = $region60
      $region59: #{_rpn_conv_relu_level.1} parent=5 // pred_region
        %s916 = ssub.s32 %s18, 2
        // Predicated region
        $region61: #{_rpn_conv_relu_level.1} parent=59 // pred_check
          %p917 = pneg %p152
        $region62: #{_rpn_conv_relu_level.1} parent=59 // pred_check_branch
          %919 = sbr.rel (%p917) target = $region64
        $region63: #{_rpn_conv_relu_level.1} parent=59 // pred_region
          %s920 = sand.u32 %s137, 1
          %s921 = scalar_lea.sflag [#allocation4], %s920
          %s922 = sand.u32 %s137, 1
          %s923 = smul.addr %s922, 8
          %s924 = scalar_lea.vmem [#allocation10], %s923
          %925 = dma.done %s921, 128
        $region64: #{_rpn_conv_relu_level.1} parent=59 // pred_fallthru
          _
      $region60: #{_rpn_conv_relu_level.1} parent=5 // pred_fallthru
        _
    $region6: #{_rpn_conv_relu_level.1} parent=1 // loop_footer
      %s22 = sadd.s32 1, %s18
    $region7: #{_rpn_conv_relu_level.1} parent=1 // loop_footer_branch
      %17 = sbr.rel target = $region3
    $region8: #{_rpn_conv_relu_level.1} parent=1 // loop_exit
      _
    %926 = vsyncpa [#allocation3], 1
    %s927 = scalar_lea.sflag [#allocation3], 1
    %928 = vsyncpa %s927, 1
    %929 = vsyncpa [#allocation6], 1
    %930 = vsyncpa [#allocation9], 1
    %931 = vsyncpa [#allocation4], 1
    %s932 = scalar_lea.sflag [#allocation4], 1
    %933 = vsyncpa %s932, 1

</llo_original>
